<compile_context>
chip_gen: v5e
topology: v5e:2x2
jax: 0.10.0
libtpu: 0.0.40
codegen_flags: <defaults>
</compile_context>

<pallas_src>
import jax
import jax.numpy as jnp
from jax.experimental import pallas as pl
from jax.experimental.pallas import tpu as pltpu


def _sigmoid_mul_kernel(gate_ref, x_ref, o_ref):
    # gate_ref: (R, 1), x_ref: (R, HW); gate broadcasts along the lane axis.
    g = gate_ref[...].astype(jnp.float32)
    # sigmoid(g) = 1 / (1 + exp(-g)) kept entirely on the EUP slot:
    #   exp -> EUP transcendental, approx reciprocal -> EUP vrcp.
    e = jnp.exp(-g)
    gate = pl.reciprocal(1.0 + e, approx=True)

    x = x_ref[...]
    if x.dtype == jnp.bfloat16:
        # bf16 VALU multiply (v6e/v7x): half the vregs vs an f32 upcast.
        o_ref[...] = (x * gate.astype(jnp.bfloat16)).astype(o_ref.dtype)
    else:
        o_ref[...] = (x.astype(jnp.float32) * gate).astype(o_ref.dtype)


def sigmoid_mul(x244, x240, *, donate_x=False):
    """x244: (N, C, 1, 1) gate, x240: (N, C, H, W) activation -> (N, C, H, W).

    Set donate_x=True only when the caller can donate x240's buffer; it aliases
    the output onto the activation input (removes a separate HBM allocation).
    """
    n, c, h, w = x240.shape
    assert x244.shape == (n, c, 1, 1)

    rows, hw = n * c, h * w
    # Free (contiguous) views: channels on sublanes, flattened spatial on lanes.
    x_2d = x240.reshape(rows, hw)
    g_2d = x244.reshape(rows, 1)

    itemsize = jnp.dtype(x240.dtype).itemsize
    # (8,128)-tile-padded VMEM footprint per activation-sized buffer.
    pad_rows = -(-rows // 8) * 8
    pad_lanes = -(-hw // 128) * 128
    padded_bytes = pad_rows * pad_lanes * itemsize

    cost = pl.CostEstimate(
        flops=2 * rows * hw + 2 * rows,
        transcendentals=rows,
        bytes_accessed=(2 * rows * hw + rows) * itemsize,
    )

    common = dict(
        out_shape=jax.ShapeDtypeStruct((rows, hw), x240.dtype),
        cost_estimate=cost,
    )
    if donate_x:
        common["input_output_aliases"] = {1: 0}  # alias x_2d -> out

    # Budget well under the 32 MiB default scoped-VMEM limit (v7x physical: 64 MiB).
    VMEM_BUDGET = 8 * 1024 * 1024

    if 3 * padded_bytes <= VMEM_BUDGET:
        # Gridless: whole arrays resident in VMEM, kernel runs exactly once.
        out_2d = pl.pallas_call(
            _sigmoid_mul_kernel,
            in_specs=[
                pl.BlockSpec(memory_space=pltpu.MemorySpace.VMEM),  # gate (R, 1)
                pl.BlockSpec(memory_space=pltpu.MemorySpace.VMEM),  # act  (R, HW)
            ],
            out_specs=pl.BlockSpec(memory_space=pltpu.MemorySpace.VMEM),
            **common,
        )(g_2d, x_2d)
    else:
        # Row-tiled fallback for larger shapes (keeps per-step VMEM bounded).
        block_rows = min(rows, 512)  # multiple of 8, or the full row extent
        per_block = (-(-block_rows // 8) * 8) * pad_lanes * itemsize
        assert 3 * per_block <= VMEM_BUDGET, (
            "sigmoid_mul: per-block VMEM footprint too large; shrink block_rows "
            "or tile the spatial dimension as well."
        )
        out_2d = pl.pallas_call(
            _sigmoid_mul_kernel,
            grid=(pl.cdiv(rows, block_rows),),
            in_specs=[
                pl.BlockSpec((block_rows, 1), lambda i: (i, 0)),
                pl.BlockSpec((block_rows, hw), lambda i: (i, 0)),
            ],
            out_specs=pl.BlockSpec((block_rows, hw), lambda i: (i, 0)),
            compiler_params=pltpu.CompilerParams(
                dimension_semantics=("parallel",)),
            **common,
        )(g_2d, x_2d)

    return out_2d.reshape(n, c, h, w)


if __name__ == "__main__":
    key = jax.random.PRNGKey(0)
    k1, k2 = jax.random.split(key)

    # Shapes from the module's forward: x240 (1,672,7,7), x244 (1,672,1,1)
    x240 = jax.random.normal(k1, (1, 672, 7, 7), dtype=jnp.float32)
    x244 = jax.random.normal(k2, (1, 672, 1, 1), dtype=jnp.float32)

    out = sigmoid_mul(x244, x240)
    out = jax.block_until_ready(out)

    # Reference check in plain JAX (tolerance accounts for approx reciprocal,
    # rel. error ~2^-12 in the gate).
    ref = x240 * jax.nn.sigmoid(x244)
    assert out.shape == (1, 672, 7, 7)
    assert jnp.allclose(out, ref, atol=5e-3, rtol=5e-3), float(
        jnp.max(jnp.abs(out - ref)))

    print("KERNEL_OK")
</pallas_src>

<mosaic_0001>
module attributes {stable_mosaic.version = 11 : i64} {
  func.func @_sigmoid_mul_kernel(%arg0: memref<672x1xf32, #tpu.memory_space<vmem>>, %arg1: memref<672x49xf32, #tpu.memory_space<vmem>>, %arg2: memref<672x49xf32, #tpu.memory_space<vmem>>) attributes {dimension_semantics = [], scalar_prefetch = 0 : i64, scratch_operands = 0 : i64, tpu.core_type = #tpu.core_type<tc>} {
    %c0 = arith.constant 0 : index
    %c0_0 = arith.constant 0 : index
    %0 = vector.load %arg0[%c0, %c0_0] : memref<672x1xf32, #tpu.memory_space<vmem>>, vector<672x1xf32>
    %cst = arith.constant 0.000000e+00 : f32
    %1 = vector.broadcast %cst : f32 to vector<672x1xf32>
    %2 = arith.subf %1, %0 : vector<672x1xf32>
    %3 = math.exp %2 : vector<672x1xf32>
    %cst_1 = arith.constant 1.000000e+00 : f32
    %4 = vector.broadcast %cst_1 : f32 to vector<672x1xf32>
    %5 = arith.addf %4, %3 : vector<672x1xf32>
    %6 = tpu.reciprocal %5 {approx = true} : vector<672x1xf32> -> vector<672x1xf32>
    %c0_2 = arith.constant 0 : index
    %c0_3 = arith.constant 0 : index
    %7 = vector.load %arg1[%c0_2, %c0_3] : memref<672x49xf32, #tpu.memory_space<vmem>>, vector<672x49xf32>
    %8 = vector.broadcast %6 : vector<672x1xf32> to vector<672x49xf32>
    %9 = arith.mulf %7, %8 : vector<672x49xf32>
    %c0_4 = arith.constant 0 : index
    %c0_5 = arith.constant 0 : index
    %10 = vector.load %arg2[%c0_4, %c0_5] : memref<672x49xf32, #tpu.memory_space<vmem>>, vector<672x49xf32>
    tpu.vector_store %arg2[%c0_4, %c0_5], %9 {strides = array<i32>} : memref<672x49xf32, #tpu.memory_space<vmem>>, vector<672x49xf32>,
    return
  }
}

</mosaic_0001>

<llo_original>
// kernel: tpu_custom_call.1
$region0: #{tpu_custom_call.1}
  #allocation0 [shape = 'u32[]', space=smem, size = 0x4, offset = 0x4, fixed_abs, tag = 'smem constant byte address 0x4 - core index']
  #allocation1 [shape = 'u32[72,128]{1,0:T(1,128)}', space=vmem, size = 0x9000, scoped, tag = 'internal scratch']
  %s0 = inlined_call_operand.vmem [shape: f32[672,1], index: 0, kind: input, shape index: {}]
  %s1 = inlined_call_operand.vmem [shape: f32[672,49], index: 1, kind: input, shape index: {}]
  %s2 = inlined_call_operand.vmem [shape: f32[672,49], index: 2, kind: output, shape index: {}]
  %s3 = sld [smem:[#allocation0]]
  $region18: #{tpu_custom_call.1} parent=0
    _
  %s5 = ssub.s32 1, %s3
  %s6 = scalar_select 0, %s5, %s3
  // Predicated region
  $region2: #{tpu_custom_call.1} parent=0 // pred_check
    _
  $region3: #{tpu_custom_call.1} parent=0 // pred_check_branch
    %8 = sbr.rel (0) target = $region5
  $region4: #{tpu_custom_call.1} parent=0 // pred_region
    _
  $region5: #{tpu_custom_call.1} parent=0 // pred_fallthru
    _
  // Predicated region
  $region6: #{tpu_custom_call.1} parent=0 // pred_check
    _
  $region7: #{tpu_custom_call.1} parent=0 // pred_check_branch
    %10 = sbr.rel (0) target = $region9
  $region8: #{tpu_custom_call.1} parent=0 // pred_region
    _
  $region9: #{tpu_custom_call.1} parent=0 // pred_fallthru
    _
  %v11 = vld [vmem:[%s0] sm:$0xff]
  %v12 = vld [vmem:[%s0 + $0x8] sm:$0xff]
  %v13 = vld [vmem:[%s0 + $0x10] sm:$0xff]
  %v14 = vld [vmem:[%s0 + $0x18] sm:$0xff]
  %v15 = vld [vmem:[%s0 + $0x20] sm:$0xff]
  %v16 = vld [vmem:[%s0 + $0x28] sm:$0xff]
  %v17 = vld [vmem:[%s0 + $0x30] sm:$0xff]
  %v18 = vld [vmem:[%s0 + $0x38] sm:$0xff]
  %v19 = vld [vmem:[%s0 + $0x40] sm:$0xff]
  %v20 = vld [vmem:[%s0 + $0x48] sm:$0xff]
  %v21 = vld [vmem:[%s0 + $0x50] sm:$0xff]
  %v22 = vld [vmem:[%s0 + $0x58] sm:$0xff]
  %v23 = vld [vmem:[%s0 + $0x60] sm:$0xff]
  %v24 = vld [vmem:[%s0 + $0x68] sm:$0xff]
  %v25 = vld [vmem:[%s0 + $0x70] sm:$0xff]
  %v26 = vld [vmem:[%s0 + $0x78] sm:$0xff]
  %v27 = vld [vmem:[%s0 + $0x80] sm:$0xff]
  %v28 = vld [vmem:[%s0 + $0x88] sm:$0xff]
  %v29 = vld [vmem:[%s0 + $0x90] sm:$0xff]
  %v30 = vld [vmem:[%s0 + $0x98] sm:$0xff]
  %v31 = vld [vmem:[%s0 + $0xa0] sm:$0xff]
  %v32 = vld [vmem:[%s0 + $0xa8] sm:$0xff]
  %v33 = vld [vmem:[%s0 + $0xb0] sm:$0xff]
  %v34 = vld [vmem:[%s0 + $0xb8] sm:$0xff]
  %v35 = vld [vmem:[%s0 + $0xc0] sm:$0xff]
  %v36 = vld [vmem:[%s0 + $0xc8] sm:$0xff]
  %v37 = vld [vmem:[%s0 + $0xd0] sm:$0xff]
  %v38 = vld [vmem:[%s0 + $0xd8] sm:$0xff]
  %v39 = vld [vmem:[%s0 + $0xe0] sm:$0xff]
  %v40 = vld [vmem:[%s0 + $0xe8] sm:$0xff]
  %v41 = vld [vmem:[%s0 + $0xf0] sm:$0xff]
  %v42 = vld [vmem:[%s0 + $0xf8] sm:$0xff]
  %v43 = vld [vmem:[%s0 + $0x100] sm:$0xff]
  %v44 = vld [vmem:[%s0 + $0x108] sm:$0xff]
  %v45 = vld [vmem:[%s0 + $0x110] sm:$0xff]
  %v46 = vld [vmem:[%s0 + $0x118] sm:$0xff]
  %v47 = vld [vmem:[%s0 + $0x120] sm:$0xff]
  %v48 = vld [vmem:[%s0 + $0x128] sm:$0xff]
  %v49 = vld [vmem:[%s0 + $0x130] sm:$0xff]
  %v50 = vld [vmem:[%s0 + $0x138] sm:$0xff]
  %v51 = vld [vmem:[%s0 + $0x140] sm:$0xff]
  %v52 = vld [vmem:[%s0 + $0x148] sm:$0xff]
  %v53 = vld [vmem:[%s0 + $0x150] sm:$0xff]
  %v54 = vld [vmem:[%s0 + $0x158] sm:$0xff]
  %v55 = vld [vmem:[%s0 + $0x160] sm:$0xff]
  %v56 = vld [vmem:[%s0 + $0x168] sm:$0xff]
  %v57 = vld [vmem:[%s0 + $0x170] sm:$0xff]
  %v58 = vld [vmem:[%s0 + $0x178] sm:$0xff]
  %v59 = vld [vmem:[%s0 + $0x180] sm:$0xff]
  %v60 = vld [vmem:[%s0 + $0x188] sm:$0xff]
  %v61 = vld [vmem:[%s0 + $0x190] sm:$0xff]
  %v62 = vld [vmem:[%s0 + $0x198] sm:$0xff]
  %v63 = vld [vmem:[%s0 + $0x1a0] sm:$0xff]
  %v64 = vld [vmem:[%s0 + $0x1a8] sm:$0xff]
  %v65 = vld [vmem:[%s0 + $0x1b0] sm:$0xff]
  %v66 = vld [vmem:[%s0 + $0x1b8] sm:$0xff]
  %v67 = vld [vmem:[%s0 + $0x1c0] sm:$0xff]
  %v68 = vld [vmem:[%s0 + $0x1c8] sm:$0xff]
  %v69 = vld [vmem:[%s0 + $0x1d0] sm:$0xff]
  %v70 = vld [vmem:[%s0 + $0x1d8] sm:$0xff]
  %v71 = vld [vmem:[%s0 + $0x1e0] sm:$0xff]
  %v72 = vld [vmem:[%s0 + $0x1e8] sm:$0xff]
  %v73 = vld [vmem:[%s0 + $0x1f0] sm:$0xff]
  %v74 = vld [vmem:[%s0 + $0x1f8] sm:$0xff]
  %v75 = vld [vmem:[%s0 + $0x200] sm:$0xff]
  %v76 = vld [vmem:[%s0 + $0x208] sm:$0xff]
  %v77 = vld [vmem:[%s0 + $0x210] sm:$0xff]
  %v78 = vld [vmem:[%s0 + $0x218] sm:$0xff]
  %v79 = vld [vmem:[%s0 + $0x220] sm:$0xff]
  %v80 = vld [vmem:[%s0 + $0x228] sm:$0xff]
  %v81 = vld [vmem:[%s0 + $0x230] sm:$0xff]
  %v82 = vld [vmem:[%s0 + $0x238] sm:$0xff]
  %v83 = vld [vmem:[%s0 + $0x240] sm:$0xff]
  %v84 = vld [vmem:[%s0 + $0x248] sm:$0xff]
  %v85 = vld [vmem:[%s0 + $0x250] sm:$0xff]
  %v86 = vld [vmem:[%s0 + $0x258] sm:$0xff]
  %v87 = vld [vmem:[%s0 + $0x260] sm:$0xff]
  %v88 = vld [vmem:[%s0 + $0x268] sm:$0xff]
  %v89 = vld [vmem:[%s0 + $0x270] sm:$0xff]
  %v90 = vld [vmem:[%s0 + $0x278] sm:$0xff]
  %v91 = vld [vmem:[%s0 + $0x280] sm:$0xff]
  %v92 = vld [vmem:[%s0 + $0x288] sm:$0xff]
  %v93 = vld [vmem:[%s0 + $0x290] sm:$0xff]
  %v94 = vld [vmem:[%s0 + $0x298] sm:$0xff]
  %v95 = vsub.f32 0.0, %v11
  %v96 = vsub.f32 0.0, %v12
  %v97 = vsub.f32 0.0, %v13
  %v98 = vsub.f32 0.0, %v14
  %v99 = vsub.f32 0.0, %v15
  %v100 = vsub.f32 0.0, %v16
  %v101 = vsub.f32 0.0, %v17
  %v102 = vsub.f32 0.0, %v18
  %v103 = vsub.f32 0.0, %v19
  %v104 = vsub.f32 0.0, %v20
  %v105 = vsub.f32 0.0, %v21
  %v106 = vsub.f32 0.0, %v22
  %v107 = vsub.f32 0.0, %v23
  %v108 = vsub.f32 0.0, %v24
  %v109 = vsub.f32 0.0, %v25
  %v110 = vsub.f32 0.0, %v26
  %v111 = vsub.f32 0.0, %v27
  %v112 = vsub.f32 0.0, %v28
  %v113 = vsub.f32 0.0, %v29
  %v114 = vsub.f32 0.0, %v30
  %v115 = vsub.f32 0.0, %v31
  %v116 = vsub.f32 0.0, %v32
  %v117 = vsub.f32 0.0, %v33
  %v118 = vsub.f32 0.0, %v34
  %v119 = vsub.f32 0.0, %v35
  %v120 = vsub.f32 0.0, %v36
  %v121 = vsub.f32 0.0, %v37
  %v122 = vsub.f32 0.0, %v38
  %v123 = vsub.f32 0.0, %v39
  %v124 = vsub.f32 0.0, %v40
  %v125 = vsub.f32 0.0, %v41
  %v126 = vsub.f32 0.0, %v42
  %v127 = vsub.f32 0.0, %v43
  %v128 = vsub.f32 0.0, %v44
  %v129 = vsub.f32 0.0, %v45
  %v130 = vsub.f32 0.0, %v46
  %v131 = vsub.f32 0.0, %v47
  %v132 = vsub.f32 0.0, %v48
  %v133 = vsub.f32 0.0, %v49
  %v134 = vsub.f32 0.0, %v50
  %v135 = vsub.f32 0.0, %v51
  %v136 = vsub.f32 0.0, %v52
  %v137 = vsub.f32 0.0, %v53
  %v138 = vsub.f32 0.0, %v54
  %v139 = vsub.f32 0.0, %v55
  %v140 = vsub.f32 0.0, %v56
  %v141 = vsub.f32 0.0, %v57
  %v142 = vsub.f32 0.0, %v58
  %v143 = vsub.f32 0.0, %v59
  %v144 = vsub.f32 0.0, %v60
  %v145 = vsub.f32 0.0, %v61
  %v146 = vsub.f32 0.0, %v62
  %v147 = vsub.f32 0.0, %v63
  %v148 = vsub.f32 0.0, %v64
  %v149 = vsub.f32 0.0, %v65
  %v150 = vsub.f32 0.0, %v66
  %v151 = vsub.f32 0.0, %v67
  %v152 = vsub.f32 0.0, %v68
  %v153 = vsub.f32 0.0, %v69
  %v154 = vsub.f32 0.0, %v70
  %v155 = vsub.f32 0.0, %v71
  %v156 = vsub.f32 0.0, %v72
  %v157 = vsub.f32 0.0, %v73
  %v158 = vsub.f32 0.0, %v74
  %v159 = vsub.f32 0.0, %v75
  %v160 = vsub.f32 0.0, %v76
  %v161 = vsub.f32 0.0, %v77
  %v162 = vsub.f32 0.0, %v78
  %v163 = vsub.f32 0.0, %v79
  %v164 = vsub.f32 0.0, %v80
  %v165 = vsub.f32 0.0, %v81
  %v166 = vsub.f32 0.0, %v82
  %v167 = vsub.f32 0.0, %v83
  %v168 = vsub.f32 0.0, %v84
  %v169 = vsub.f32 0.0, %v85
  %v170 = vsub.f32 0.0, %v86
  %v171 = vsub.f32 0.0, %v87
  %v172 = vsub.f32 0.0, %v88
  %v173 = vsub.f32 0.0, %v89
  %v174 = vsub.f32 0.0, %v90
  %v175 = vsub.f32 0.0, %v91
  %v176 = vsub.f32 0.0, %v92
  %v177 = vsub.f32 0.0, %v93
  %v178 = vsub.f32 0.0, %v94
  %v179 = vmul.f32 %v95, 1.442695
  %v180 = vpow.pop %v179
  %v181 = vmul.f32 %v96, 1.442695
  %v182 = vpow.pop %v181
  %v183 = vmul.f32 %v97, 1.442695
  %v184 = vpow.pop %v183
  %v185 = vmul.f32 %v98, 1.442695
  %v186 = vpow.pop %v185
  %v187 = vmul.f32 %v99, 1.442695
  %v188 = vpow.pop %v187
  %v189 = vmul.f32 %v100, 1.442695
  %v190 = vpow.pop %v189
  %v191 = vmul.f32 %v101, 1.442695
  %v192 = vpow.pop %v191
  %v193 = vmul.f32 %v102, 1.442695
  %v194 = vpow.pop %v193
  %v195 = vmul.f32 %v103, 1.442695
  %v196 = vpow.pop %v195
  %v197 = vmul.f32 %v104, 1.442695
  %v198 = vpow.pop %v197
  %v199 = vmul.f32 %v105, 1.442695
  %v200 = vpow.pop %v199
  %v201 = vmul.f32 %v106, 1.442695
  %v202 = vpow.pop %v201
  %v203 = vmul.f32 %v107, 1.442695
  %v204 = vpow.pop %v203
  %v205 = vmul.f32 %v108, 1.442695
  %v206 = vpow.pop %v205
  %v207 = vmul.f32 %v109, 1.442695
  %v208 = vpow.pop %v207
  %v209 = vmul.f32 %v110, 1.442695
  %v210 = vpow.pop %v209
  %v211 = vmul.f32 %v111, 1.442695
  %v212 = vpow.pop %v211
  %v213 = vmul.f32 %v112, 1.442695
  %v214 = vpow.pop %v213
  %v215 = vmul.f32 %v113, 1.442695
  %v216 = vpow.pop %v215
  %v217 = vmul.f32 %v114, 1.442695
  %v218 = vpow.pop %v217
  %v219 = vmul.f32 %v115, 1.442695
  %v220 = vpow.pop %v219
  %v221 = vmul.f32 %v116, 1.442695
  %v222 = vpow.pop %v221
  %v223 = vmul.f32 %v117, 1.442695
  %v224 = vpow.pop %v223
  %v225 = vmul.f32 %v118, 1.442695
  %v226 = vpow.pop %v225
  %v227 = vmul.f32 %v119, 1.442695
  %v228 = vpow.pop %v227
  %v229 = vmul.f32 %v120, 1.442695
  %v230 = vpow.pop %v229
  %v231 = vmul.f32 %v121, 1.442695
  %v232 = vpow.pop %v231
  %v233 = vmul.f32 %v122, 1.442695
  %v234 = vpow.pop %v233
  %v235 = vmul.f32 %v123, 1.442695
  %v236 = vpow.pop %v235
  %v237 = vmul.f32 %v124, 1.442695
  %v238 = vpow.pop %v237
  %v239 = vmul.f32 %v125, 1.442695
  %v240 = vpow.pop %v239
  %v241 = vmul.f32 %v126, 1.442695
  %v242 = vpow.pop %v241
  %v243 = vmul.f32 %v127, 1.442695
  %v244 = vpow.pop %v243
  %v245 = vmul.f32 %v128, 1.442695
  %v246 = vpow.pop %v245
  %v247 = vmul.f32 %v129, 1.442695
  %v248 = vpow.pop %v247
  %v249 = vmul.f32 %v130, 1.442695
  %v250 = vpow.pop %v249
  %v251 = vmul.f32 %v131, 1.442695
  %v252 = vpow.pop %v251
  %v253 = vmul.f32 %v132, 1.442695
  %v254 = vpow.pop %v253
  %v255 = vmul.f32 %v133, 1.442695
  %v256 = vpow.pop %v255
  %v257 = vmul.f32 %v134, 1.442695
  %v258 = vpow.pop %v257
  %v259 = vmul.f32 %v135, 1.442695
  %v260 = vpow.pop %v259
  %v261 = vmul.f32 %v136, 1.442695
  %v262 = vpow.pop %v261
  %v263 = vmul.f32 %v137, 1.442695
  %v264 = vpow.pop %v263
  %v265 = vmul.f32 %v138, 1.442695
  %v266 = vpow.pop %v265
  %v267 = vmul.f32 %v139, 1.442695
  %v268 = vpow.pop %v267
  %v269 = vmul.f32 %v140, 1.442695
  %v270 = vpow.pop %v269
  %v271 = vmul.f32 %v141, 1.442695
  %v272 = vpow.pop %v271
  %v273 = vmul.f32 %v142, 1.442695
  %v274 = vpow.pop %v273
  %v275 = vmul.f32 %v143, 1.442695
  %v276 = vpow.pop %v275
  %v277 = vmul.f32 %v144, 1.442695
  %v278 = vpow.pop %v277
  %v279 = vmul.f32 %v145, 1.442695
  %v280 = vpow.pop %v279
  %v281 = vmul.f32 %v146, 1.442695
  %v282 = vpow.pop %v281
  %v283 = vmul.f32 %v147, 1.442695
  %v284 = vpow.pop %v283
  %v285 = vmul.f32 %v148, 1.442695
  %v286 = vpow.pop %v285
  %v287 = vmul.f32 %v149, 1.442695
  %v288 = vpow.pop %v287
  %v289 = vmul.f32 %v150, 1.442695
  %v290 = vpow.pop %v289
  %v291 = vmul.f32 %v151, 1.442695
  %v292 = vpow.pop %v291
  %v293 = vmul.f32 %v152, 1.442695
  %v294 = vpow.pop %v293
  %v295 = vmul.f32 %v153, 1.442695
  %v296 = vpow.pop %v295
  %v297 = vmul.f32 %v154, 1.442695
  %v298 = vpow.pop %v297
  %v299 = vmul.f32 %v155, 1.442695
  %v300 = vpow.pop %v299
  %v301 = vmul.f32 %v156, 1.442695
  %v302 = vpow.pop %v301
  %v303 = vmul.f32 %v157, 1.442695
  %v304 = vpow.pop %v303
  %v305 = vmul.f32 %v158, 1.442695
  %v306 = vpow.pop %v305
  %v307 = vmul.f32 %v159, 1.442695
  %v308 = vpow.pop %v307
  %v309 = vmul.f32 %v160, 1.442695
  %v310 = vpow.pop %v309
  %v311 = vmul.f32 %v161, 1.442695
  %v312 = vpow.pop %v311
  %v313 = vmul.f32 %v162, 1.442695
  %v314 = vpow.pop %v313
  %v315 = vmul.f32 %v163, 1.442695
  %v316 = vpow.pop %v315
  %v317 = vmul.f32 %v164, 1.442695
  %v318 = vpow.pop %v317
  %v319 = vmul.f32 %v165, 1.442695
  %v320 = vpow.pop %v319
  %v321 = vmul.f32 %v166, 1.442695
  %v322 = vpow.pop %v321
  %v323 = vmul.f32 %v167, 1.442695
  %v324 = vpow.pop %v323
  %v325 = vmul.f32 %v168, 1.442695
  %v326 = vpow.pop %v325
  %v327 = vmul.f32 %v169, 1.442695
  %v328 = vpow.pop %v327
  %v329 = vmul.f32 %v170, 1.442695
  %v330 = vpow.pop %v329
  %v331 = vmul.f32 %v171, 1.442695
  %v332 = vpow.pop %v331
  %v333 = vmul.f32 %v172, 1.442695
  %v334 = vpow.pop %v333
  %v335 = vmul.f32 %v173, 1.442695
  %v336 = vpow.pop %v335
  %v337 = vmul.f32 %v174, 1.442695
  %v338 = vpow.pop %v337
  %v339 = vmul.f32 %v175, 1.442695
  %v340 = vpow.pop %v339
  %v341 = vmul.f32 %v176, 1.442695
  %v342 = vpow.pop %v341
  %v343 = vmul.f32 %v177, 1.442695
  %v344 = vpow.pop %v343
  %v345 = vmul.f32 %v178, 1.442695
  %v346 = vpow.pop %v345
  %v347 = vadd.f32 %v180, 1.0
  %v348 = vadd.f32 %v182, 1.0
  %v349 = vadd.f32 %v184, 1.0
  %v350 = vadd.f32 %v186, 1.0
  %v351 = vadd.f32 %v188, 1.0
  %v352 = vadd.f32 %v190, 1.0
  %v353 = vadd.f32 %v192, 1.0
  %v354 = vadd.f32 %v194, 1.0
  %v355 = vadd.f32 %v196, 1.0
  %v356 = vadd.f32 %v198, 1.0
  %v357 = vadd.f32 %v200, 1.0
  %v358 = vadd.f32 %v202, 1.0
  %v359 = vadd.f32 %v204, 1.0
  %v360 = vadd.f32 %v206, 1.0
  %v361 = vadd.f32 %v208, 1.0
  %v362 = vadd.f32 %v210, 1.0
  %v363 = vadd.f32 %v212, 1.0
  %v364 = vadd.f32 %v214, 1.0
  %v365 = vadd.f32 %v216, 1.0
  %v366 = vadd.f32 %v218, 1.0
  %v367 = vadd.f32 %v220, 1.0
  %v368 = vadd.f32 %v222, 1.0
  %v369 = vadd.f32 %v224, 1.0
  %v370 = vadd.f32 %v226, 1.0
  %v371 = vadd.f32 %v228, 1.0
  %v372 = vadd.f32 %v230, 1.0
  %v373 = vadd.f32 %v232, 1.0
  %v374 = vadd.f32 %v234, 1.0
  %v375 = vadd.f32 %v236, 1.0
  %v376 = vadd.f32 %v238, 1.0
  %v377 = vadd.f32 %v240, 1.0
  %v378 = vadd.f32 %v242, 1.0
  %v379 = vadd.f32 %v244, 1.0
  %v380 = vadd.f32 %v246, 1.0
  %v381 = vadd.f32 %v248, 1.0
  %v382 = vadd.f32 %v250, 1.0
  %v383 = vadd.f32 %v252, 1.0
  %v384 = vadd.f32 %v254, 1.0
  %v385 = vadd.f32 %v256, 1.0
  %v386 = vadd.f32 %v258, 1.0
  %v387 = vadd.f32 %v260, 1.0
  %v388 = vadd.f32 %v262, 1.0
  %v389 = vadd.f32 %v264, 1.0
  %v390 = vadd.f32 %v266, 1.0
  %v391 = vadd.f32 %v268, 1.0
  %v392 = vadd.f32 %v270, 1.0
  %v393 = vadd.f32 %v272, 1.0
  %v394 = vadd.f32 %v274, 1.0
  %v395 = vadd.f32 %v276, 1.0
  %v396 = vadd.f32 %v278, 1.0
  %v397 = vadd.f32 %v280, 1.0
  %v398 = vadd.f32 %v282, 1.0
  %v399 = vadd.f32 %v284, 1.0
  %v400 = vadd.f32 %v286, 1.0
  %v401 = vadd.f32 %v288, 1.0
  %v402 = vadd.f32 %v290, 1.0
  %v403 = vadd.f32 %v292, 1.0
  %v404 = vadd.f32 %v294, 1.0
  %v405 = vadd.f32 %v296, 1.0
  %v406 = vadd.f32 %v298, 1.0
  %v407 = vadd.f32 %v300, 1.0
  %v408 = vadd.f32 %v302, 1.0
  %v409 = vadd.f32 %v304, 1.0
  %v410 = vadd.f32 %v306, 1.0
  %v411 = vadd.f32 %v308, 1.0
  %v412 = vadd.f32 %v310, 1.0
  %v413 = vadd.f32 %v312, 1.0
  %v414 = vadd.f32 %v314, 1.0
  %v415 = vadd.f32 %v316, 1.0
  %v416 = vadd.f32 %v318, 1.0
  %v417 = vadd.f32 %v320, 1.0
  %v418 = vadd.f32 %v322, 1.0
  %v419 = vadd.f32 %v324, 1.0
  %v420 = vadd.f32 %v326, 1.0
  %v421 = vadd.f32 %v328, 1.0
  %v422 = vadd.f32 %v330, 1.0
  %v423 = vadd.f32 %v332, 1.0
  %v424 = vadd.f32 %v334, 1.0
  %v425 = vadd.f32 %v336, 1.0
  %v426 = vadd.f32 %v338, 1.0
  %v427 = vadd.f32 %v340, 1.0
  %v428 = vadd.f32 %v342, 1.0
  %v429 = vadd.f32 %v344, 1.0
  %v430 = vadd.f32 %v346, 1.0
  %v431 = vrcp.pop %v347
  %v432 = vrcp.pop %v348
  %v433 = vrcp.pop %v349
  %v434 = vrcp.pop %v350
  %v435 = vrcp.pop %v351
  %v436 = vrcp.pop %v352
  %v437 = vrcp.pop %v353
  %v438 = vrcp.pop %v354
  %v439 = vrcp.pop %v355
  %v440 = vrcp.pop %v356
  %v441 = vrcp.pop %v357
  %v442 = vrcp.pop %v358
  %v443 = vrcp.pop %v359
  %v444 = vrcp.pop %v360
  %v445 = vrcp.pop %v361
  %v446 = vrcp.pop %v362
  %v447 = vrcp.pop %v363
  %v448 = vrcp.pop %v364
  %v449 = vrcp.pop %v365
  %v450 = vrcp.pop %v366
  %v451 = vrcp.pop %v367
  %v452 = vrcp.pop %v368
  %v453 = vrcp.pop %v369
  %v454 = vrcp.pop %v370
  %v455 = vrcp.pop %v371
  %v456 = vrcp.pop %v372
  %v457 = vrcp.pop %v373
  %v458 = vrcp.pop %v374
  %v459 = vrcp.pop %v375
  %v460 = vrcp.pop %v376
  %v461 = vrcp.pop %v377
  %v462 = vrcp.pop %v378
  %v463 = vrcp.pop %v379
  %v464 = vrcp.pop %v380
  %v465 = vrcp.pop %v381
  %v466 = vrcp.pop %v382
  %v467 = vrcp.pop %v383
  %v468 = vrcp.pop %v384
  %v469 = vrcp.pop %v385
  %v470 = vrcp.pop %v386
  %v471 = vrcp.pop %v387
  %v472 = vrcp.pop %v388
  %v473 = vrcp.pop %v389
  %v474 = vrcp.pop %v390
  %v475 = vrcp.pop %v391
  %v476 = vrcp.pop %v392
  %v477 = vrcp.pop %v393
  %v478 = vrcp.pop %v394
  %v479 = vrcp.pop %v395
  %v480 = vrcp.pop %v396
  %v481 = vrcp.pop %v397
  %v482 = vrcp.pop %v398
  %v483 = vrcp.pop %v399
  %v484 = vrcp.pop %v400
  %v485 = vrcp.pop %v401
  %v486 = vrcp.pop %v402
  %v487 = vrcp.pop %v403
  %v488 = vrcp.pop %v404
  %v489 = vrcp.pop %v405
  %v490 = vrcp.pop %v406
  %v491 = vrcp.pop %v407
  %v492 = vrcp.pop %v408
  %v493 = vrcp.pop %v409
  %v494 = vrcp.pop %v410
  %v495 = vrcp.pop %v411
  %v496 = vrcp.pop %v412
  %v497 = vrcp.pop %v413
  %v498 = vrcp.pop %v414
  %v499 = vrcp.pop %v415
  %v500 = vrcp.pop %v416
  %v501 = vrcp.pop %v417
  %v502 = vrcp.pop %v418
  %v503 = vrcp.pop %v419
  %v504 = vrcp.pop %v420
  %v505 = vrcp.pop %v421
  %v506 = vrcp.pop %v422
  %v507 = vrcp.pop %v423
  %v508 = vrcp.pop %v424
  %v509 = vrcp.pop %v425
  %v510 = vrcp.pop %v426
  %v511 = vrcp.pop %v427
  %v512 = vrcp.pop %v428
  %v513 = vrcp.pop %v429
  %v514 = vrcp.pop %v430
  %v515 = vld [vmem:[%s1] sm:$0xff]
  %v516 = vld [vmem:[%s1 + $0x8] sm:$0xff]
  %v517 = vld [vmem:[%s1 + $0x10] sm:$0xff]
  %v518 = vld [vmem:[%s1 + $0x18] sm:$0xff]
  %v519 = vld [vmem:[%s1 + $0x20] sm:$0xff]
  %v520 = vld [vmem:[%s1 + $0x28] sm:$0xff]
  %v521 = vld [vmem:[%s1 + $0x30] sm:$0xff]
  %v522 = vld [vmem:[%s1 + $0x38] sm:$0xff]
  %v523 = vld [vmem:[%s1 + $0x40] sm:$0xff]
  %v524 = vld [vmem:[%s1 + $0x48] sm:$0xff]
  %v525 = vld [vmem:[%s1 + $0x50] sm:$0xff]
  %v526 = vld [vmem:[%s1 + $0x58] sm:$0xff]
  %v527 = vld [vmem:[%s1 + $0x60] sm:$0xff]
  %v528 = vld [vmem:[%s1 + $0x68] sm:$0xff]
  %v529 = vld [vmem:[%s1 + $0x70] sm:$0xff]
  %v530 = vld [vmem:[%s1 + $0x78] sm:$0xff]
  %v531 = vld [vmem:[%s1 + $0x80] sm:$0xff]
  %v532 = vld [vmem:[%s1 + $0x88] sm:$0xff]
  %v533 = vld [vmem:[%s1 + $0x90] sm:$0xff]
  %v534 = vld [vmem:[%s1 + $0x98] sm:$0xff]
  %v535 = vld [vmem:[%s1 + $0xa0] sm:$0xff]
  %v536 = vld [vmem:[%s1 + $0xa8] sm:$0xff]
  %v537 = vld [vmem:[%s1 + $0xb0] sm:$0xff]
  %v538 = vld [vmem:[%s1 + $0xb8] sm:$0xff]
  %v539 = vld [vmem:[%s1 + $0xc0] sm:$0xff]
  %v540 = vld [vmem:[%s1 + $0xc8] sm:$0xff]
  %v541 = vld [vmem:[%s1 + $0xd0] sm:$0xff]
  %v542 = vld [vmem:[%s1 + $0xd8] sm:$0xff]
  %v543 = vld [vmem:[%s1 + $0xe0] sm:$0xff]
  %v544 = vld [vmem:[%s1 + $0xe8] sm:$0xff]
  %v545 = vld [vmem:[%s1 + $0xf0] sm:$0xff]
  %v546 = vld [vmem:[%s1 + $0xf8] sm:$0xff]
  %v547 = vld [vmem:[%s1 + $0x100] sm:$0xff]
  %v548 = vld [vmem:[%s1 + $0x108] sm:$0xff]
  %v549 = vld [vmem:[%s1 + $0x110] sm:$0xff]
  %v550 = vld [vmem:[%s1 + $0x118] sm:$0xff]
  %v551 = vld [vmem:[%s1 + $0x120] sm:$0xff]
  %v552 = vld [vmem:[%s1 + $0x128] sm:$0xff]
  %v553 = vld [vmem:[%s1 + $0x130] sm:$0xff]
  %v554 = vld [vmem:[%s1 + $0x138] sm:$0xff]
  %v555 = vld [vmem:[%s1 + $0x140] sm:$0xff]
  %v556 = vld [vmem:[%s1 + $0x148] sm:$0xff]
  %v557 = vld [vmem:[%s1 + $0x150] sm:$0xff]
  %v558 = vld [vmem:[%s1 + $0x158] sm:$0xff]
  %v559 = vld [vmem:[%s1 + $0x160] sm:$0xff]
  %v560 = vld [vmem:[%s1 + $0x168] sm:$0xff]
  %v561 = vld [vmem:[%s1 + $0x170] sm:$0xff]
  %v562 = vld [vmem:[%s1 + $0x178] sm:$0xff]
  %v563 = vld [vmem:[%s1 + $0x180] sm:$0xff]
  %v564 = vld [vmem:[%s1 + $0x188] sm:$0xff]
  %v565 = vld [vmem:[%s1 + $0x190] sm:$0xff]
  %v566 = vld [vmem:[%s1 + $0x198] sm:$0xff]
  %v567 = vld [vmem:[%s1 + $0x1a0] sm:$0xff]
  %v568 = vld [vmem:[%s1 + $0x1a8] sm:$0xff]
  %v569 = vld [vmem:[%s1 + $0x1b0] sm:$0xff]
  %v570 = vld [vmem:[%s1 + $0x1b8] sm:$0xff]
  %v571 = vld [vmem:[%s1 + $0x1c0] sm:$0xff]
  %v572 = vld [vmem:[%s1 + $0x1c8] sm:$0xff]
  %v573 = vld [vmem:[%s1 + $0x1d0] sm:$0xff]
  %v574 = vld [vmem:[%s1 + $0x1d8] sm:$0xff]
  %v575 = vld [vmem:[%s1 + $0x1e0] sm:$0xff]
  %v576 = vld [vmem:[%s1 + $0x1e8] sm:$0xff]
  %v577 = vld [vmem:[%s1 + $0x1f0] sm:$0xff]
  %v578 = vld [vmem:[%s1 + $0x1f8] sm:$0xff]
  %v579 = vld [vmem:[%s1 + $0x200] sm:$0xff]
  %v580 = vld [vmem:[%s1 + $0x208] sm:$0xff]
  %v581 = vld [vmem:[%s1 + $0x210] sm:$0xff]
  %v582 = vld [vmem:[%s1 + $0x218] sm:$0xff]
  %v583 = vld [vmem:[%s1 + $0x220] sm:$0xff]
  %v584 = vld [vmem:[%s1 + $0x228] sm:$0xff]
  %v585 = vld [vmem:[%s1 + $0x230] sm:$0xff]
  %v586 = vld [vmem:[%s1 + $0x238] sm:$0xff]
  %v587 = vld [vmem:[%s1 + $0x240] sm:$0xff]
  %v588 = vld [vmem:[%s1 + $0x248] sm:$0xff]
  %v589 = vld [vmem:[%s1 + $0x250] sm:$0xff]
  %v590 = vld [vmem:[%s1 + $0x258] sm:$0xff]
  %v591 = vld [vmem:[%s1 + $0x260] sm:$0xff]
  %v592 = vld [vmem:[%s1 + $0x268] sm:$0xff]
  %v593 = vld [vmem:[%s1 + $0x270] sm:$0xff]
  %v594 = vld [vmem:[%s1 + $0x278] sm:$0xff]
  %v595 = vld [vmem:[%s1 + $0x280] sm:$0xff]
  %v596 = vld [vmem:[%s1 + $0x288] sm:$0xff]
  %v597 = vld [vmem:[%s1 + $0x290] sm:$0xff]
  %v598 = vld [vmem:[%s1 + $0x298] sm:$0xff]
  %600 = vset.pattern.permute.xlu0 0
  %601 = vperm.xlu0 %600, %v431
  %v602 = vpop.permute.xlu0 %601
  %605 = vset.pattern.permute.xlu0 0
  %606 = vperm.xlu0 %605, %v432
  %v607 = vpop.permute.xlu0 %606
  %610 = vset.pattern.permute.xlu0 0
  %611 = vperm.xlu0 %610, %v433
  %v612 = vpop.permute.xlu0 %611
  %615 = vset.pattern.permute.xlu0 0
  %616 = vperm.xlu0 %615, %v434
  %v617 = vpop.permute.xlu0 %616
  %620 = vset.pattern.permute.xlu0 0
  %621 = vperm.xlu0 %620, %v435
  %v622 = vpop.permute.xlu0 %621
  %625 = vset.pattern.permute.xlu0 0
  %626 = vperm.xlu0 %625, %v436
  %v627 = vpop.permute.xlu0 %626
  %630 = vset.pattern.permute.xlu0 0
  %631 = vperm.xlu0 %630, %v437
  %v632 = vpop.permute.xlu0 %631
  %635 = vset.pattern.permute.xlu0 0
  %636 = vperm.xlu0 %635, %v438
  %v637 = vpop.permute.xlu0 %636
  %640 = vset.pattern.permute.xlu0 0
  %641 = vperm.xlu0 %640, %v439
  %v642 = vpop.permute.xlu0 %641
  %645 = vset.pattern.permute.xlu0 0
  %646 = vperm.xlu0 %645, %v440
  %v647 = vpop.permute.xlu0 %646
  %650 = vset.pattern.permute.xlu0 0
  %651 = vperm.xlu0 %650, %v441
  %v652 = vpop.permute.xlu0 %651
  %655 = vset.pattern.permute.xlu0 0
  %656 = vperm.xlu0 %655, %v442
  %v657 = vpop.permute.xlu0 %656
  %660 = vset.pattern.permute.xlu0 0
  %661 = vperm.xlu0 %660, %v443
  %v662 = vpop.permute.xlu0 %661
  %665 = vset.pattern.permute.xlu0 0
  %666 = vperm.xlu0 %665, %v444
  %v667 = vpop.permute.xlu0 %666
  %670 = vset.pattern.permute.xlu0 0
  %671 = vperm.xlu0 %670, %v445
  %v672 = vpop.permute.xlu0 %671
  %675 = vset.pattern.permute.xlu0 0
  %676 = vperm.xlu0 %675, %v446
  %v677 = vpop.permute.xlu0 %676
  %680 = vset.pattern.permute.xlu0 0
  %681 = vperm.xlu0 %680, %v447
  %v682 = vpop.permute.xlu0 %681
  %685 = vset.pattern.permute.xlu0 0
  %686 = vperm.xlu0 %685, %v448
  %v687 = vpop.permute.xlu0 %686
  %690 = vset.pattern.permute.xlu0 0
  %691 = vperm.xlu0 %690, %v449
  %v692 = vpop.permute.xlu0 %691
  %695 = vset.pattern.permute.xlu0 0
  %696 = vperm.xlu0 %695, %v450
  %v697 = vpop.permute.xlu0 %696
  %700 = vset.pattern.permute.xlu0 0
  %701 = vperm.xlu0 %700, %v451
  %v702 = vpop.permute.xlu0 %701
  %705 = vset.pattern.permute.xlu0 0
  %706 = vperm.xlu0 %705, %v452
  %v707 = vpop.permute.xlu0 %706
  %710 = vset.pattern.permute.xlu0 0
  %711 = vperm.xlu0 %710, %v453
  %v712 = vpop.permute.xlu0 %711
  %715 = vset.pattern.permute.xlu0 0
  %716 = vperm.xlu0 %715, %v454
  %v717 = vpop.permute.xlu0 %716
  %720 = vset.pattern.permute.xlu0 0
  %721 = vperm.xlu0 %720, %v455
  %v722 = vpop.permute.xlu0 %721
  %725 = vset.pattern.permute.xlu0 0
  %726 = vperm.xlu0 %725, %v456
  %v727 = vpop.permute.xlu0 %726
  %730 = vset.pattern.permute.xlu0 0
  %731 = vperm.xlu0 %730, %v457
  %v732 = vpop.permute.xlu0 %731
  %735 = vset.pattern.permute.xlu0 0
  %736 = vperm.xlu0 %735, %v458
  %v737 = vpop.permute.xlu0 %736
  %740 = vset.pattern.permute.xlu0 0
  %741 = vperm.xlu0 %740, %v459
  %v742 = vpop.permute.xlu0 %741
  %745 = vset.pattern.permute.xlu0 0
  %746 = vperm.xlu0 %745, %v460
  %v747 = vpop.permute.xlu0 %746
  %750 = vset.pattern.permute.xlu0 0
  %751 = vperm.xlu0 %750, %v461
  %v752 = vpop.permute.xlu0 %751
  %755 = vset.pattern.permute.xlu0 0
  %756 = vperm.xlu0 %755, %v462
  %v757 = vpop.permute.xlu0 %756
  %760 = vset.pattern.permute.xlu0 0
  %761 = vperm.xlu0 %760, %v463
  %v762 = vpop.permute.xlu0 %761
  %765 = vset.pattern.permute.xlu0 0
  %766 = vperm.xlu0 %765, %v464
  %v767 = vpop.permute.xlu0 %766
  %770 = vset.pattern.permute.xlu0 0
  %771 = vperm.xlu0 %770, %v465
  %v772 = vpop.permute.xlu0 %771
  %775 = vset.pattern.permute.xlu0 0
  %776 = vperm.xlu0 %775, %v466
  %v777 = vpop.permute.xlu0 %776
  %780 = vset.pattern.permute.xlu0 0
  %781 = vperm.xlu0 %780, %v467
  %v782 = vpop.permute.xlu0 %781
  %785 = vset.pattern.permute.xlu0 0
  %786 = vperm.xlu0 %785, %v468
  %v787 = vpop.permute.xlu0 %786
  %790 = vset.pattern.permute.xlu0 0
  %791 = vperm.xlu0 %790, %v469
  %v792 = vpop.permute.xlu0 %791
  %795 = vset.pattern.permute.xlu0 0
  %796 = vperm.xlu0 %795, %v470
  %v797 = vpop.permute.xlu0 %796
  %800 = vset.pattern.permute.xlu0 0
  %801 = vperm.xlu0 %800, %v471
  %v802 = vpop.permute.xlu0 %801
  %805 = vset.pattern.permute.xlu0 0
  %806 = vperm.xlu0 %805, %v472
  %v807 = vpop.permute.xlu0 %806
  %810 = vset.pattern.permute.xlu0 0
  %811 = vperm.xlu0 %810, %v473
  %v812 = vpop.permute.xlu0 %811
  %815 = vset.pattern.permute.xlu0 0
  %816 = vperm.xlu0 %815, %v474
  %v817 = vpop.permute.xlu0 %816
  %820 = vset.pattern.permute.xlu0 0
  %821 = vperm.xlu0 %820, %v475
  %v822 = vpop.permute.xlu0 %821
  %825 = vset.pattern.permute.xlu0 0
  %826 = vperm.xlu0 %825, %v476
  %v827 = vpop.permute.xlu0 %826
  %830 = vset.pattern.permute.xlu0 0
  %831 = vperm.xlu0 %830, %v477
  %v832 = vpop.permute.xlu0 %831
  %835 = vset.pattern.permute.xlu0 0
  %836 = vperm.xlu0 %835, %v478
  %v837 = vpop.permute.xlu0 %836
  %840 = vset.pattern.permute.xlu0 0
  %841 = vperm.xlu0 %840, %v479
  %v842 = vpop.permute.xlu0 %841
  %845 = vset.pattern.permute.xlu0 0
  %846 = vperm.xlu0 %845, %v480
  %v847 = vpop.permute.xlu0 %846
  %850 = vset.pattern.permute.xlu0 0
  %851 = vperm.xlu0 %850, %v481
  %v852 = vpop.permute.xlu0 %851
  %855 = vset.pattern.permute.xlu0 0
  %856 = vperm.xlu0 %855, %v482
  %v857 = vpop.permute.xlu0 %856
  %860 = vset.pattern.permute.xlu0 0
  %861 = vperm.xlu0 %860, %v483
  %v862 = vpop.permute.xlu0 %861
  %865 = vset.pattern.permute.xlu0 0
  %866 = vperm.xlu0 %865, %v484
  %v867 = vpop.permute.xlu0 %866
  %870 = vset.pattern.permute.xlu0 0
  %871 = vperm.xlu0 %870, %v485
  %v872 = vpop.permute.xlu0 %871
  %875 = vset.pattern.permute.xlu0 0
  %876 = vperm.xlu0 %875, %v486
  %v877 = vpop.permute.xlu0 %876
  %880 = vset.pattern.permute.xlu0 0
  %881 = vperm.xlu0 %880, %v487
  %v882 = vpop.permute.xlu0 %881
  %885 = vset.pattern.permute.xlu0 0
  %886 = vperm.xlu0 %885, %v488
  %v887 = vpop.permute.xlu0 %886
  %890 = vset.pattern.permute.xlu0 0
  %891 = vperm.xlu0 %890, %v489
  %v892 = vpop.permute.xlu0 %891
  %895 = vset.pattern.permute.xlu0 0
  %896 = vperm.xlu0 %895, %v490
  %v897 = vpop.permute.xlu0 %896
  %900 = vset.pattern.permute.xlu0 0
  %901 = vperm.xlu0 %900, %v491
  %v902 = vpop.permute.xlu0 %901
  %905 = vset.pattern.permute.xlu0 0
  %906 = vperm.xlu0 %905, %v492
  %v907 = vpop.permute.xlu0 %906
  %910 = vset.pattern.permute.xlu0 0
  %911 = vperm.xlu0 %910, %v493
  %v912 = vpop.permute.xlu0 %911
  %915 = vset.pattern.permute.xlu0 0
  %916 = vperm.xlu0 %915, %v494
  %v917 = vpop.permute.xlu0 %916
  %920 = vset.pattern.permute.xlu0 0
  %921 = vperm.xlu0 %920, %v495
  %v922 = vpop.permute.xlu0 %921
  %925 = vset.pattern.permute.xlu0 0
  %926 = vperm.xlu0 %925, %v496
  %v927 = vpop.permute.xlu0 %926
  %930 = vset.pattern.permute.xlu0 0
  %931 = vperm.xlu0 %930, %v497
  %v932 = vpop.permute.xlu0 %931
  %935 = vset.pattern.permute.xlu0 0
  %936 = vperm.xlu0 %935, %v498
  %v937 = vpop.permute.xlu0 %936
  %940 = vset.pattern.permute.xlu0 0
  %941 = vperm.xlu0 %940, %v499
  %v942 = vpop.permute.xlu0 %941
  %945 = vset.pattern.permute.xlu0 0
  %946 = vperm.xlu0 %945, %v500
  %v947 = vpop.permute.xlu0 %946
  %950 = vset.pattern.permute.xlu0 0
  %951 = vperm.xlu0 %950, %v501
  %v952 = vpop.permute.xlu0 %951
  %955 = vset.pattern.permute.xlu0 0
  %956 = vperm.xlu0 %955, %v502
  %v957 = vpop.permute.xlu0 %956
  %960 = vset.pattern.permute.xlu0 0
  %961 = vperm.xlu0 %960, %v503
  %v962 = vpop.permute.xlu0 %961
  %965 = vset.pattern.permute.xlu0 0
  %966 = vperm.xlu0 %965, %v504
  %v967 = vpop.permute.xlu0 %966
  %970 = vset.pattern.permute.xlu0 0
  %971 = vperm.xlu0 %970, %v505
  %v972 = vpop.permute.xlu0 %971
  %975 = vset.pattern.permute.xlu0 0
  %976 = vperm.xlu0 %975, %v506
  %v977 = vpop.permute.xlu0 %976
  %980 = vset.pattern.permute.xlu0 0
  %981 = vperm.xlu0 %980, %v507
  %v982 = vpop.permute.xlu0 %981
  %985 = vset.pattern.permute.xlu0 0
  %986 = vperm.xlu0 %985, %v508
  %v987 = vpop.permute.xlu0 %986
  %990 = vset.pattern.permute.xlu0 0
  %991 = vperm.xlu0 %990, %v509
  %v992 = vpop.permute.xlu0 %991
  %995 = vset.pattern.permute.xlu0 0
  %996 = vperm.xlu0 %995, %v510
  %v997 = vpop.permute.xlu0 %996
  %1000 = vset.pattern.permute.xlu0 0
  %1001 = vperm.xlu0 %1000, %v511
  %v1002 = vpop.permute.xlu0 %1001
  %1005 = vset.pattern.permute.xlu0 0
  %1006 = vperm.xlu0 %1005, %v512
  %v1007 = vpop.permute.xlu0 %1006
  %1010 = vset.pattern.permute.xlu0 0
  %1011 = vperm.xlu0 %1010, %v513
  %v1012 = vpop.permute.xlu0 %1011
  %1015 = vset.pattern.permute.xlu0 0
  %1016 = vperm.xlu0 %1015, %v514
  %v1017 = vpop.permute.xlu0 %1016
  %v1019 = vmul.f32 %v515, %v602
  %v1020 = vmul.f32 %v516, %v607
  %v1021 = vmul.f32 %v517, %v612
  %v1022 = vmul.f32 %v518, %v617
  %v1023 = vmul.f32 %v519, %v622
  %v1024 = vmul.f32 %v520, %v627
  %v1025 = vmul.f32 %v521, %v632
  %v1026 = vmul.f32 %v522, %v637
  %v1027 = vmul.f32 %v523, %v642
  %v1028 = vmul.f32 %v524, %v647
  %v1029 = vmul.f32 %v525, %v652
  %v1030 = vmul.f32 %v526, %v657
  %v1031 = vmul.f32 %v527, %v662
  %v1032 = vmul.f32 %v528, %v667
  %v1033 = vmul.f32 %v529, %v672
  %v1034 = vmul.f32 %v530, %v677
  %v1035 = vmul.f32 %v531, %v682
  %v1036 = vmul.f32 %v532, %v687
  %v1037 = vmul.f32 %v533, %v692
  %v1038 = vmul.f32 %v534, %v697
  %v1039 = vmul.f32 %v535, %v702
  %v1040 = vmul.f32 %v536, %v707
  %v1041 = vmul.f32 %v537, %v712
  %v1042 = vmul.f32 %v538, %v717
  %v1043 = vmul.f32 %v539, %v722
  %v1044 = vmul.f32 %v540, %v727
  %v1045 = vmul.f32 %v541, %v732
  %v1046 = vmul.f32 %v542, %v737
  %v1047 = vmul.f32 %v543, %v742
  %v1048 = vmul.f32 %v544, %v747
  %v1049 = vmul.f32 %v545, %v752
  %v1050 = vmul.f32 %v546, %v757
  %v1051 = vmul.f32 %v547, %v762
  %v1052 = vmul.f32 %v548, %v767
  %v1053 = vmul.f32 %v549, %v772
  %v1054 = vmul.f32 %v550, %v777
  %v1055 = vmul.f32 %v551, %v782
  %v1056 = vmul.f32 %v552, %v787
  %v1057 = vmul.f32 %v553, %v792
  %v1058 = vmul.f32 %v554, %v797
  %v1059 = vmul.f32 %v555, %v802
  %v1060 = vmul.f32 %v556, %v807
  %v1061 = vmul.f32 %v557, %v812
  %v1062 = vmul.f32 %v558, %v817
  %v1063 = vmul.f32 %v559, %v822
  %v1064 = vmul.f32 %v560, %v827
  %v1065 = vmul.f32 %v561, %v832
  %v1066 = vmul.f32 %v562, %v837
  %v1067 = vmul.f32 %v563, %v842
  %v1068 = vmul.f32 %v564, %v847
  %v1069 = vmul.f32 %v565, %v852
  %v1070 = vmul.f32 %v566, %v857
  %v1071 = vmul.f32 %v567, %v862
  %v1072 = vmul.f32 %v568, %v867
  %v1073 = vmul.f32 %v569, %v872
  %v1074 = vmul.f32 %v570, %v877
  %v1075 = vmul.f32 %v571, %v882
  %v1076 = vmul.f32 %v572, %v887
  %v1077 = vmul.f32 %v573, %v892
  %v1078 = vmul.f32 %v574, %v897
  %v1079 = vmul.f32 %v575, %v902
  %v1080 = vmul.f32 %v576, %v907
  %v1081 = vmul.f32 %v577, %v912
  %v1082 = vmul.f32 %v578, %v917
  %v1083 = vmul.f32 %v579, %v922
  %v1084 = vmul.f32 %v580, %v927
  %v1085 = vmul.f32 %v581, %v932
  %v1086 = vmul.f32 %v582, %v937
  %v1087 = vmul.f32 %v583, %v942
  %v1088 = vmul.f32 %v584, %v947
  %v1089 = vmul.f32 %v585, %v952
  %v1090 = vmul.f32 %v586, %v957
  %v1091 = vmul.f32 %v587, %v962
  %v1092 = vmul.f32 %v588, %v967
  %v1093 = vmul.f32 %v589, %v972
  %v1094 = vmul.f32 %v590, %v977
  %v1095 = vmul.f32 %v591, %v982
  %v1096 = vmul.f32 %v592, %v987
  %v1097 = vmul.f32 %v593, %v992
  %v1098 = vmul.f32 %v594, %v997
  %v1099 = vmul.f32 %v595, %v1002
  %v1100 = vmul.f32 %v596, %v1007
  %v1101 = vmul.f32 %v597, %v1012
  %v1102 = vmul.f32 %v598, %v1017
  %vm1103 = vcmask 400384
  %1104 = vst.msk [vmem:[%s2] sm:$0xff] %vm1103, %v1019
  %1105 = vst.msk [vmem:[%s2 + $0x8] sm:$0xff] %vm1103, %v1020
  %1106 = vst.msk [vmem:[%s2 + $0x10] sm:$0xff] %vm1103, %v1021
  %1107 = vst.msk [vmem:[%s2 + $0x18] sm:$0xff] %vm1103, %v1022
  %1108 = vst.msk [vmem:[%s2 + $0x20] sm:$0xff] %vm1103, %v1023
  %1109 = vst.msk [vmem:[%s2 + $0x28] sm:$0xff] %vm1103, %v1024
  %1110 = vst.msk [vmem:[%s2 + $0x30] sm:$0xff] %vm1103, %v1025
  %1111 = vst.msk [vmem:[%s2 + $0x38] sm:$0xff] %vm1103, %v1026
  %1112 = vst.msk [vmem:[%s2 + $0x40] sm:$0xff] %vm1103, %v1027
  %1113 = vst.msk [vmem:[%s2 + $0x48] sm:$0xff] %vm1103, %v1028
  %1114 = vst.msk [vmem:[%s2 + $0x50] sm:$0xff] %vm1103, %v1029
  %1115 = vst.msk [vmem:[%s2 + $0x58] sm:$0xff] %vm1103, %v1030
  %1116 = vst.msk [vmem:[%s2 + $0x60] sm:$0xff] %vm1103, %v1031
  %1117 = vst.msk [vmem:[%s2 + $0x68] sm:$0xff] %vm1103, %v1032
  %1118 = vst.msk [vmem:[%s2 + $0x70] sm:$0xff] %vm1103, %v1033
  %1119 = vst.msk [vmem:[%s2 + $0x78] sm:$0xff] %vm1103, %v1034
  %1120 = vst.msk [vmem:[%s2 + $0x80] sm:$0xff] %vm1103, %v1035
  %1121 = vst.msk [vmem:[%s2 + $0x88] sm:$0xff] %vm1103, %v1036
  %1122 = vst.msk [vmem:[%s2 + $0x90] sm:$0xff] %vm1103, %v1037
  %1123 = vst.msk [vmem:[%s2 + $0x98] sm:$0xff] %vm1103, %v1038
  %1124 = vst.msk [vmem:[%s2 + $0xa0] sm:$0xff] %vm1103, %v1039
  %1125 = vst.msk [vmem:[%s2 + $0xa8] sm:$0xff] %vm1103, %v1040
  %1126 = vst.msk [vmem:[%s2 + $0xb0] sm:$0xff] %vm1103, %v1041
  %1127 = vst.msk [vmem:[%s2 + $0xb8] sm:$0xff] %vm1103, %v1042
  %1128 = vst.msk [vmem:[%s2 + $0xc0] sm:$0xff] %vm1103, %v1043
  %1129 = vst.msk [vmem:[%s2 + $0xc8] sm:$0xff] %vm1103, %v1044
  %1130 = vst.msk [vmem:[%s2 + $0xd0] sm:$0xff] %vm1103, %v1045
  %1131 = vst.msk [vmem:[%s2 + $0xd8] sm:$0xff] %vm1103, %v1046
  %1132 = vst.msk [vmem:[%s2 + $0xe0] sm:$0xff] %vm1103, %v1047
  %1133 = vst.msk [vmem:[%s2 + $0xe8] sm:$0xff] %vm1103, %v1048
  %1134 = vst.msk [vmem:[%s2 + $0xf0] sm:$0xff] %vm1103, %v1049
  %1135 = vst.msk [vmem:[%s2 + $0xf8] sm:$0xff] %vm1103, %v1050
  %1136 = vst.msk [vmem:[%s2 + $0x100] sm:$0xff] %vm1103, %v1051
  %1137 = vst.msk [vmem:[%s2 + $0x108] sm:$0xff] %vm1103, %v1052
  %1138 = vst.msk [vmem:[%s2 + $0x110] sm:$0xff] %vm1103, %v1053
  %1139 = vst.msk [vmem:[%s2 + $0x118] sm:$0xff] %vm1103, %v1054
  %1140 = vst.msk [vmem:[%s2 + $0x120] sm:$0xff] %vm1103, %v1055
  %1141 = vst.msk [vmem:[%s2 + $0x128] sm:$0xff] %vm1103, %v1056
  %1142 = vst.msk [vmem:[%s2 + $0x130] sm:$0xff] %vm1103, %v1057
  %1143 = vst.msk [vmem:[%s2 + $0x138] sm:$0xff] %vm1103, %v1058
  %1144 = vst.msk [vmem:[%s2 + $0x140] sm:$0xff] %vm1103, %v1059
  %1145 = vst.msk [vmem:[%s2 + $0x148] sm:$0xff] %vm1103, %v1060
  %1146 = vst.msk [vmem:[%s2 + $0x150] sm:$0xff] %vm1103, %v1061
  %1147 = vst.msk [vmem:[%s2 + $0x158] sm:$0xff] %vm1103, %v1062
  %1148 = vst.msk [vmem:[%s2 + $0x160] sm:$0xff] %vm1103, %v1063
  %1149 = vst.msk [vmem:[%s2 + $0x168] sm:$0xff] %vm1103, %v1064
  %1150 = vst.msk [vmem:[%s2 + $0x170] sm:$0xff] %vm1103, %v1065
  %1151 = vst.msk [vmem:[%s2 + $0x178] sm:$0xff] %vm1103, %v1066
  %1152 = vst.msk [vmem:[%s2 + $0x180] sm:$0xff] %vm1103, %v1067
  %1153 = vst.msk [vmem:[%s2 + $0x188] sm:$0xff] %vm1103, %v1068
  %1154 = vst.msk [vmem:[%s2 + $0x190] sm:$0xff] %vm1103, %v1069
  %1155 = vst.msk [vmem:[%s2 + $0x198] sm:$0xff] %vm1103, %v1070
  %1156 = vst.msk [vmem:[%s2 + $0x1a0] sm:$0xff] %vm1103, %v1071
  %1157 = vst.msk [vmem:[%s2 + $0x1a8] sm:$0xff] %vm1103, %v1072
  %1158 = vst.msk [vmem:[%s2 + $0x1b0] sm:$0xff] %vm1103, %v1073
  %1159 = vst.msk [vmem:[%s2 + $0x1b8] sm:$0xff] %vm1103, %v1074
  %1160 = vst.msk [vmem:[%s2 + $0x1c0] sm:$0xff] %vm1103, %v1075
  %1161 = vst.msk [vmem:[%s2 + $0x1c8] sm:$0xff] %vm1103, %v1076
  %1162 = vst.msk [vmem:[%s2 + $0x1d0] sm:$0xff] %vm1103, %v1077
  %1163 = vst.msk [vmem:[%s2 + $0x1d8] sm:$0xff] %vm1103, %v1078
  %1164 = vst.msk [vmem:[%s2 + $0x1e0] sm:$0xff] %vm1103, %v1079
  %1165 = vst.msk [vmem:[%s2 + $0x1e8] sm:$0xff] %vm1103, %v1080
  %1166 = vst.msk [vmem:[%s2 + $0x1f0] sm:$0xff] %vm1103, %v1081
  %1167 = vst.msk [vmem:[%s2 + $0x1f8] sm:$0xff] %vm1103, %v1082
  %1168 = vst.msk [vmem:[%s2 + $0x200] sm:$0xff] %vm1103, %v1083
  %1169 = vst.msk [vmem:[%s2 + $0x208] sm:$0xff] %vm1103, %v1084
  %1170 = vst.msk [vmem:[%s2 + $0x210] sm:$0xff] %vm1103, %v1085
  %1171 = vst.msk [vmem:[%s2 + $0x218] sm:$0xff] %vm1103, %v1086
  %1172 = vst.msk [vmem:[%s2 + $0x220] sm:$0xff] %vm1103, %v1087
  %1173 = vst.msk [vmem:[%s2 + $0x228] sm:$0xff] %vm1103, %v1088
  %1174 = vst.msk [vmem:[%s2 + $0x230] sm:$0xff] %vm1103, %v1089
  %1175 = vst.msk [vmem:[%s2 + $0x238] sm:$0xff] %vm1103, %v1090
  %1176 = vst.msk [vmem:[%s2 + $0x240] sm:$0xff] %vm1103, %v1091
  %1177 = vst.msk [vmem:[%s2 + $0x248] sm:$0xff] %vm1103, %v1092
  %1178 = vst.msk [vmem:[%s2 + $0x250] sm:$0xff] %vm1103, %v1093
  %1179 = vst.msk [vmem:[%s2 + $0x258] sm:$0xff] %vm1103, %v1094
  %1180 = vst.msk [vmem:[%s2 + $0x260] sm:$0xff] %vm1103, %v1095
  %1181 = vst.msk [vmem:[%s2 + $0x268] sm:$0xff] %vm1103, %v1096
  %1182 = vst.msk [vmem:[%s2 + $0x270] sm:$0xff] %vm1103, %v1097
  %1183 = vst.msk [vmem:[%s2 + $0x278] sm:$0xff] %vm1103, %v1098
  %1184 = vst.msk [vmem:[%s2 + $0x280] sm:$0xff] %vm1103, %v1099
  %1185 = vst.msk [vmem:[%s2 + $0x288] sm:$0xff] %vm1103, %v1100
  %1186 = vst.msk [vmem:[%s2 + $0x290] sm:$0xff] %vm1103, %v1101
  %1187 = vst.msk [vmem:[%s2 + $0x298] sm:$0xff] %vm1103, %v1102
  // Predicated region
  $region10: #{tpu_custom_call.1} parent=0 // pred_check
    _
  $region11: #{tpu_custom_call.1} parent=0 // pred_check_branch
    %1189 = sbr.rel (0) target = $region13
  $region12: #{tpu_custom_call.1} parent=0 // pred_region
    _
  $region13: #{tpu_custom_call.1} parent=0 // pred_fallthru
    _
  // Predicated region
  $region14: #{tpu_custom_call.1} parent=0 // pred_check
    _
  $region15: #{tpu_custom_call.1} parent=0 // pred_check_branch
    %1191 = sbr.rel (0) target = $region17
  $region16: #{tpu_custom_call.1} parent=0 // pred_region
    _
  $region17: #{tpu_custom_call.1} parent=0 // pred_fallthru
    _

</llo_original>
